<compile_context>
chip_gen: v5e
topology: v5e:2x2
jax: 0.10.0
libtpu: 0.0.40
codegen_flags: <defaults>
</compile_context>

<pallas_src>
import functools

import jax
import jax.numpy as jnp
from jax.experimental import pallas as pl
from jax.experimental.pallas import tpu as pltpu


def _downsample_kernel(x_ev_ref, x_od_ref, w_ref, o_ref, carry_ref):
    """Fused Conv1d(k=3, s=2, p=1, bias=False) + LeakyReLU(0.1) for one (n, Lo-tile).

    x_ev_ref: (1, Cin, TLo)   even input samples  x[:, :, 2m]
    x_od_ref: (1, Cin, TLo)   odd  input samples  x[:, :, 2m+1]
    w_ref:    (3, Cout, Cin)  conv taps; w_ref[k] multiplies x[:, :, 2m-1+k]
    o_ref:    (1, Cout, TLo)  output tile (lane dim = TLo -> lane-dense stores)
    carry_ref:(Cin, 1)        last odd sample of the previous tile (left halo)
    """
    t = pl.program_id(1)

    ev = x_ev_ref[0]                                    # (Cin, TLo)
    od = x_od_ref[0]                                    # (Cin, TLo)

    # Tile 0's left halo is the conv's zero pad (padding=1).
    @pl.when(t == 0)
    def _():
        carry_ref[...] = jnp.zeros_like(carry_ref)

    # x[:, :, 2m-1]: odd stream shifted right by one lane; lane 0 comes from the
    # carry (previous tile's last odd sample, or the zero pad on the first tile).
    rolled = pltpu.roll(od, shift=1, axis=1)
    lane = jax.lax.broadcasted_iota(jnp.int32, rolled.shape, 1)
    od_prev = jnp.where(lane == 0, carry_ref[...], rolled)

    # Hand this tile's last odd sample to the next tile (grid axis 1 is sequential).
    carry_ref[...] = od[:, -1:]

    # Three accumulating MXU dots into one f32 accumulator; (Cout, TLo) keeps the
    # long spatial dim on lanes instead of the tiny channel dim.
    acc = jnp.dot(w_ref[0], od_prev, preferred_element_type=jnp.float32)
    acc += jnp.dot(w_ref[1], ev, preferred_element_type=jnp.float32)
    acc += jnp.dot(w_ref[2], od, preferred_element_type=jnp.float32)

    acc = jnp.where(acc > 0, acc, 0.1 * acc)            # LeakyReLU(0.1) on f32
    o_ref[0] = acc.astype(o_ref.dtype)


def downsample(x_ncl, w_oik, *, compute_dtype=jnp.bfloat16, tile_lo=512):
    """x_ncl: (N, C, L) activations (PyTorch NCL); w_oik: (Cout, Cin, 3) = Conv1d.weight."""
    N, Cin, L = x_ncl.shape
    Cout, Cin_w, K = w_oik.shape
    assert K == 3 and Cin_w == Cin, (w_oik.shape, x_ncl.shape)
    Lo = (L + 1) // 2                                   # Conv1d(k=3, s=2, p=1) output length

    # Stride-2 even/odd de-interleave + dtype cast: one fused XLA pass, NCL layout
    # preserved (no transposes), spatial length stays on lanes.
    x = x_ncl.astype(compute_dtype)
    x_ev = x[:, :, 0::2]                                # x[:, :, 2m]
    x_od = x[:, :, 1::2]                                # x[:, :, 2m+1]
    if x_od.shape[-1] < Lo:                             # odd L: right zero pad (padding=1)
        x_od = jnp.pad(x_od, ((0, 0), (0, 0), (0, Lo - x_od.shape[-1])))

    # (Cout, Cin, K) -> (K, Cout, Cin): w[k] is the (Cout, Cin) matrix for tap k.
    w = jnp.transpose(w_oik, (2, 0, 1)).astype(compute_dtype)

    # Lo tile: lane-dense multiple of 128 when Lo allows, else the whole Lo.
    if Lo % 128 == 0 and Lo > tile_lo:
        tl = max((min(tile_lo, Lo) // 128) * 128, 128)
        while Lo % tl:
            tl -= 128
    else:
        tl = Lo
    num_t = Lo // tl

    out = pl.pallas_call(
        _downsample_kernel,
        out_shape=jax.ShapeDtypeStruct((N, Cout, Lo), compute_dtype),
        grid=(N, num_t),
        in_specs=[
            pl.BlockSpec((1, Cin, tl), lambda n, t: (n, 0, t)),
            pl.BlockSpec((1, Cin, tl), lambda n, t: (n, 0, t)),
            pl.BlockSpec((3, Cout, Cin), lambda n, t: (0, 0, 0)),
        ],
        out_specs=pl.BlockSpec((1, Cout, tl), lambda n, t: (n, 0, t)),
        scratch_shapes=[pltpu.VMEM((Cin, 1), compute_dtype)],
        compiler_params=pltpu.CompilerParams(
            dimension_semantics=("parallel", "arbitrary")),
    )(x_ev, x_od, w)
    return out


def _reference(x_ncl, w_oik):
    """Pure-JAX reference matching the PyTorch module (high-precision conv)."""
    y = jax.lax.conv_general_dilated(
        x_ncl, w_oik, window_strides=(2,), padding=((1, 1),),
        dimension_numbers=("NCH", "OIH", "NCH"),
        precision=jax.lax.Precision.HIGHEST)
    return jnp.where(y > 0, y, 0.1 * y)


if __name__ == "__main__":
    key = jax.random.PRNGKey(0)
    kx, kw, kx2 = jax.random.split(key, 3)

    N, C, L = 2, 4, 16
    x = jax.random.normal(kx, (N, C, L), jnp.float32)            # NCL, like PyTorch
    w = 0.1 * jax.random.normal(kw, (C, C, 3), jnp.float32)      # (Cout, Cin, K) = Conv1d.weight

    ref = _reference(x, w)

    # f32 compute path: checks the conv / LeakyReLU math tightly.
    f32_fwd = jax.jit(functools.partial(downsample, compute_dtype=jnp.float32))
    y32 = f32_fwd(x, w)
    jax.block_until_ready(y32)
    assert y32.shape == (N, C, (L + 1) // 2), y32.shape
    assert bool(jnp.allclose(y32, ref, rtol=5e-3, atol=5e-3)), \
        float(jnp.max(jnp.abs(y32 - ref)))

    # Default bf16 I/O path (halved HBM bytes, f32 accumulation in-kernel).
    y16 = jax.jit(downsample)(x, w)
    jax.block_until_ready(y16)
    assert y16.dtype == jnp.bfloat16, y16.dtype
    y16f = y16.astype(jnp.float32)
    assert bool(jnp.all(jnp.isfinite(y16f)))
    assert bool(jnp.allclose(y16f, ref, rtol=3e-2, atol=3e-2)), \
        float(jnp.max(jnp.abs(y16f - ref)))

    # Odd length also supported (PyTorch Conv1d(k=3, s=2, p=1): Lo = (L+1)//2).
    x_odd = jax.random.normal(kx2, (N, C, 15), jnp.float32)
    y_odd = f32_fwd(x_odd, w)
    jax.block_until_ready(y_odd)
    ref_odd = _reference(x_odd, w)
    assert y_odd.shape == ref_odd.shape, (y_odd.shape, ref_odd.shape)
    assert bool(jnp.allclose(y_odd, ref_odd, rtol=5e-3, atol=5e-3)), \
        float(jnp.max(jnp.abs(y_odd - ref_odd)))

    print("KERNEL_OK")
</pallas_src>

<mosaic_0001>
module attributes {stable_mosaic.version = 11 : i64} {
  func.func @_downsample_kernel(%arg0: i32, %arg1: i32, %arg2: memref<1x4x8xf32, #tpu.memory_space<vmem>>, %arg3: memref<1x4x8xf32, #tpu.memory_space<vmem>>, %arg4: memref<3x4x4xf32, #tpu.memory_space<vmem>>, %arg5: memref<1x4x8xf32, #tpu.memory_space<vmem>>, %arg6: memref<4x1xf32, #tpu.memory_space<vmem>>) attributes {dimension_semantics = [#tpu.dimension_semantics<parallel>, #tpu.dimension_semantics<arbitrary>], iteration_bounds = array<i64: 2, 1>, scalar_prefetch = 0 : i64, scratch_operands = 1 : i64, tpu.core_type = #tpu.core_type<tc>, window_params = [{transform_indices = @transform_0, window_bounds = array<i64: 1, 4, 8>}, {transform_indices = @transform_1, window_bounds = array<i64: 1, 4, 8>}, {pipeline_mode = #tpu.pipeline_mode<synchronous>, transform_indices = @transform_2, window_bounds = array<i64: 3, 4, 4>}, {transform_indices = @transform_3, window_bounds = array<i64: 1, 4, 8>}]} {
    %c0 = arith.constant 0 : index
    %c0_0 = arith.constant 0 : index
    %c0_1 = arith.constant 0 : index
    %0 = vector.load %arg2[%c0, %c0_0, %c0_1] : memref<1x4x8xf32, #tpu.memory_space<vmem>>, vector<1x4x8xf32>
    %1 = vector.shape_cast %0 : vector<1x4x8xf32> to vector<4x8xf32>
    %c0_2 = arith.constant 0 : index
    %c0_3 = arith.constant 0 : index
    %c0_4 = arith.constant 0 : index
    %2 = vector.load %arg3[%c0_2, %c0_3, %c0_4] : memref<1x4x8xf32, #tpu.memory_space<vmem>>, vector<1x4x8xf32>
    %3 = vector.shape_cast %2 : vector<1x4x8xf32> to vector<4x8xf32>
    %c0_i32 = arith.constant 0 : i32
    %4 = arith.cmpi eq, %arg1, %c0_i32 : i32
    %5 = arith.extui %4 : i1 to i32
    %c0_i32_5 = arith.constant 0 : i32
    %6 = arith.cmpi ne, %5, %c0_i32_5 : i32
    scf.if %6 {
      %cst_25 = arith.constant 0.000000e+00 : f32
      %36 = vector.broadcast %cst_25 : f32 to vector<4x1xf32>
      %c0_26 = arith.constant 0 : index
      %c0_27 = arith.constant 0 : index
      %37 = vector.load %arg6[%c0_26, %c0_27] : memref<4x1xf32, #tpu.memory_space<vmem>>, vector<4x1xf32>
      tpu.vector_store %arg6[%c0_26, %c0_27], %36 {strides = array<i32>} : memref<4x1xf32, #tpu.memory_space<vmem>>, vector<4x1xf32>,
    } else {
    }
    %c1_i32 = arith.constant 1 : i32
    %7 = tpu.dynamic_rotate %3 by %c1_i32 dim 1 : vector<4x8xf32>, i32 -> vector<4x8xf32>
    %8 = tpu.iota {dimensions = array<i32: 1>} : vector<4x8xi32>
    %c0_i32_6 = arith.constant 0 : i32
    %9 = vector.broadcast %c0_i32_6 : i32 to vector<4x8xi32>
    %10 = arith.cmpi eq, %8, %9 : vector<4x8xi32>
    %c0_7 = arith.constant 0 : index
    %c0_8 = arith.constant 0 : index
    %11 = vector.load %arg6[%c0_7, %c0_8] : memref<4x1xf32, #tpu.memory_space<vmem>>, vector<4x1xf32>
    %12 = vector.shape_cast %11 : vector<4x1xf32> to vector<4x1xf32>
    %13 = vector.broadcast %12 : vector<4x1xf32> to vector<4x8xf32>
    %14 = arith.select %10, %13, %7 : vector<4x8xi1>, vector<4x8xf32>
    %15 = vector.extract_strided_slice %3 {offsets = [0, 7], sizes = [4, 1], strides = [1, 1]} : vector<4x8xf32> to vector<4x1xf32>
    %c0_9 = arith.constant 0 : index
    %c0_10 = arith.constant 0 : index
    %16 = vector.load %arg6[%c0_9, %c0_10] : memref<4x1xf32, #tpu.memory_space<vmem>>, vector<4x1xf32>
    tpu.vector_store %arg6[%c0_9, %c0_10], %15 {strides = array<i32>} : memref<4x1xf32, #tpu.memory_space<vmem>>, vector<4x1xf32>,
    %c0_11 = arith.constant 0 : index
    %c0_12 = arith.constant 0 : index
    %c0_13 = arith.constant 0 : index
    %17 = vector.load %arg4[%c0_11, %c0_12, %c0_13] : memref<3x4x4xf32, #tpu.memory_space<vmem>>, vector<1x4x4xf32>
    %18 = vector.shape_cast %17 : vector<1x4x4xf32> to vector<4x4xf32>
    %cst = arith.constant dense<0.000000e+00> : vector<4x8xf32>
    %19 = tpu.matmul %18, %14, %cst {dimension_numbers = #tpu.dot_dimension_numbers<[1], [0], [0], [1], [0, 0, 1, 1], [], []>} : vector<4x4xf32>, vector<4x8xf32>, vector<4x8xf32> -> vector<4x8xf32>
    %c1 = arith.constant 1 : index
    %c0_14 = arith.constant 0 : index
    %c0_15 = arith.constant 0 : index
    %20 = vector.load %arg4[%c1, %c0_14, %c0_15] : memref<3x4x4xf32, #tpu.memory_space<vmem>>, vector<1x4x4xf32>
    %21 = vector.shape_cast %20 : vector<1x4x4xf32> to vector<4x4xf32>
    %cst_16 = arith.constant dense<0.000000e+00> : vector<4x8xf32>
    %22 = tpu.matmul %21, %1, %cst_16 {dimension_numbers = #tpu.dot_dimension_numbers<[1], [0], [0], [1], [0, 0, 1, 1], [], []>} : vector<4x4xf32>, vector<4x8xf32>, vector<4x8xf32> -> vector<4x8xf32>
    %23 = arith.addf %19, %22 : vector<4x8xf32>
    %c2 = arith.constant 2 : index
    %c0_17 = arith.constant 0 : index
    %c0_18 = arith.constant 0 : index
    %24 = vector.load %arg4[%c2, %c0_17, %c0_18] : memref<3x4x4xf32, #tpu.memory_space<vmem>>, vector<1x4x4xf32>
    %25 = vector.shape_cast %24 : vector<1x4x4xf32> to vector<4x4xf32>
    %cst_19 = arith.constant dense<0.000000e+00> : vector<4x8xf32>
    %26 = tpu.matmul %25, %3, %cst_19 {dimension_numbers = #tpu.dot_dimension_numbers<[1], [0], [0], [1], [0, 0, 1, 1], [], []>} : vector<4x4xf32>, vector<4x8xf32>, vector<4x8xf32> -> vector<4x8xf32>
    %27 = arith.addf %23, %26 : vector<4x8xf32>
    %cst_20 = arith.constant 0.000000e+00 : f32
    %28 = vector.broadcast %cst_20 : f32 to vector<4x8xf32>
    %29 = arith.cmpf ogt, %27, %28 : vector<4x8xf32>
    %cst_21 = arith.constant 1.000000e-01 : f32
    %30 = vector.broadcast %cst_21 : f32 to vector<4x8xf32>
    %31 = arith.mulf %30, %27 : vector<4x8xf32>
    %32 = arith.select %29, %27, %31 : vector<4x8xi1>, vector<4x8xf32>
    %c0_22 = arith.constant 0 : index
    %c0_23 = arith.constant 0 : index
    %c0_24 = arith.constant 0 : index
    %33 = vector.load %arg5[%c0_22, %c0_23, %c0_24] : memref<1x4x8xf32, #tpu.memory_space<vmem>>, vector<1x4x8xf32>
    %34 = vector.shape_cast %33 : vector<1x4x8xf32> to vector<4x8xf32>
    %35 = vector.shape_cast %32 : vector<4x8xf32> to vector<1x4x8xf32>
    tpu.vector_store %arg5[%c0_22, %c0_23, %c0_24], %35 {strides = array<i32>} : memref<1x4x8xf32, #tpu.memory_space<vmem>>, vector<1x4x8xf32>,
    return
  }
  func.func @transform_0(%arg0: i32, %arg1: i32) -> (i32, i32, i32) {
    %c0_i32 = arith.constant 0 : i32
    %c0_i32_0 = arith.constant 0 : i32
    return %arg0, %c0_i32, %arg1 : i32, i32, i32
  }
  func.func @transform_1(%arg0: i32, %arg1: i32) -> (i32, i32, i32) {
    %c0_i32 = arith.constant 0 : i32
    %c0_i32_0 = arith.constant 0 : i32
    return %arg0, %c0_i32, %arg1 : i32, i32, i32
  }
  func.func @transform_2(%arg0: i32, %arg1: i32) -> (i32, i32, i32) {
    %c0_i32 = arith.constant 0 : i32
    %c0_i32_0 = arith.constant 0 : i32
    %c0_i32_1 = arith.constant 0 : i32
    %c0_i32_2 = arith.constant 0 : i32
    return %c0_i32, %c0_i32_0, %c0_i32_1 : i32, i32, i32
  }
  func.func @transform_3(%arg0: i32, %arg1: i32) -> (i32, i32, i32) {
    %c0_i32 = arith.constant 0 : i32
    %c0_i32_0 = arith.constant 0 : i32
    return %arg0, %c0_i32, %arg1 : i32, i32, i32
  }
}

</mosaic_0001>

<llo_original>
// kernel: downsample.1
$region0: #{downsample.1}
  #allocation0 [shape = 'u32[]', space=smem, size = 0x4, offset = 0x4, fixed_abs, tag = 'smem constant byte address 0x4 - core index']
  #allocation1 [shape = 'u32[72,128]{1,0:T(1,128)}', space=vmem, size = 0x9000, scoped, tag = 'internal scratch']
  #allocation2 [shape = 'f32[4,1]{1,0:T(4,128)}', space=vmem, size = 0x800, scoped, tag = 'scratch operand']
  %s0 = inlined_call_operand.vmem [shape: f32[2,4,8], index: 0, kind: input, shape index: {}]
  %s1 = inlined_call_operand.vmem [shape: f32[2,4,8], index: 1, kind: input, shape index: {}]
  %s2 = inlined_call_operand.vmem [shape: f32[3,4,4], index: 2, kind: input, shape index: {}]
  %s3 = inlined_call_operand.hbm [shape: f32[2,4,8], index: 3, kind: output, shape index: {}]
  %s4 = sld [smem:[#allocation0]]
  $region49: #{downsample.1} parent=0
    _
  %s6 = ssub.s32 1, %s4
  %s7 = scalar_select 0, %s6, %s4
  $region1: #{downsample.1} parent=0
    #allocation3 [shape = 'u8[4096]{0}', space=vmem, size = 0x1000, scoped, tag = 'output window, operand 0']
    #allocation4 [shape = 's32[2]{0}', space=sflag, size = 0x8, scoped, tag = 'scoped memory for downsample.1']
    %8 = vsyncpa [#allocation4], 0
    %s9 = scalar_lea.sflag [#allocation4], 1
    %10 = vsyncpa %s9, 0
    loop: start=0, step=1, limit=4
    $region2: #{downsample.1} parent=1 // loop_pre_header
      _
    $region3: #{downsample.1} parent=1 // loop_header
      %s12 = sphi 0, %s16
      %p13 = scmp.ge.s32.totalorder %s12, 4
      %s19 = sphi 0, %s31
      %s20 = sphi 0, %s27
      %s21 = sphi 0, %s19
      %s22 = sphi 0, %s20
      %s23 = sphi 0, %s21
      %s24 = sphi 0, %s22
      %s36 = sphi 0, %s38
      %s39 = sphi 0, %s36
      %s40 = sphi 0, %s39
      %s56 = sphi 0, %s40
      %s64 = sphi 0, %s66
      %s67 = sphi 0, %s64
      %s68 = sphi 0, %s67
      %s84 = sphi 0, %s68
      %s88 = sphi 0, %s88
      %s90 = sphi 0, %s88
      %s91 = sphi 0, %s90
      %s105 = sphi 0, %s91
      %s113 = sphi 0, %s115
      %s116 = sphi 0, %s113
      %s117 = sphi 0, %s116
      %s133 = sphi 0, %s117
    $region4: #{downsample.1} parent=1 // loop_header_branch
      %15 = sbr.rel (%p13) target = $region8
    $region5: #{downsample.1} parent=1 // loop_body
      %s17 = ssub.s32 %s12, 1
      %s18 = ssub.s32 %s12, 2
      %s25 = sadd.s32 1, %s20
      %p26 = scmp.ge.s32.totalorder %s25, 1
      %s27 = scalar_select %p26, 0, %s25
      %s28 = sadd.s32 1, %s19
      %s29 = scalar_select %p26, %s28, %s19
      %p30 = scmp.ge.s32.totalorder %s29, 2
      %s31 = scalar_select %p30, 0, %s29
      %s32 = ssub.s32 %s19, %s31
      %s33 = ssub.s32 %s20, %s27
      %s34 = sor.u32 %s32, %s33
      %p35 = scmp.eq.s32.totalorder %s34, 0
      %s37 = sadd.s32 %s36, 1
      %s38 = scalar_select %p35, %s36, %s37
      %p41 = pneg %p35
      %p42 = scmp.eq.s32.totalorder %s12, 1
      %p43 = por %p41, %p42
      %p44 = scmp.ne.s32.totalorder %s36, %s39
      %p45 = scmp.eq.s32.totalorder %s12, 0
      %p46 = por %p44, %p45
      %p47 = scmp.ne.s32.totalorder %s36, %s39
      %p48 = scmp.eq.s32.totalorder %s17, 1
      %p49 = por %p47, %p48
      %p50 = scmp.ne.s32.totalorder %s39, %s40
      %p51 = scmp.eq.s32.totalorder %s17, 0
      %p52 = por %p50, %p51
      %p53 = scmp.ne.s32.totalorder %s39, %s40
      %p54 = scmp.eq.s32.totalorder %s18, 1
      %p55 = por %p53, %p54
      %p57 = scmp.ne.s32.totalorder %s40, %s56
      %p58 = scmp.eq.s32.totalorder %s18, 0
      %p59 = por %p57, %p58
      %s60 = ssub.s32 %s19, %s31
      %s61 = ssub.s32 %s20, %s27
      %s62 = sor.u32 %s60, %s61
      %p63 = scmp.eq.s32.totalorder %s62, 0
      %s65 = sadd.s32 %s64, 1
      %s66 = scalar_select %p63, %s64, %s65
      %p69 = pneg %p63
      %p70 = scmp.eq.s32.totalorder %s12, 1
      %p71 = por %p69, %p70
      %p72 = scmp.ne.s32.totalorder %s64, %s67
      %p73 = scmp.eq.s32.totalorder %s12, 0
      %p74 = por %p72, %p73
      %p75 = scmp.ne.s32.totalorder %s64, %s67
      %p76 = scmp.eq.s32.totalorder %s17, 1
      %p77 = por %p75, %p76
      %p78 = scmp.ne.s32.totalorder %s67, %s68
      %p79 = scmp.eq.s32.totalorder %s17, 0
      %p80 = por %p78, %p79
      %p81 = scmp.ne.s32.totalorder %s67, %s68
      %p82 = scmp.eq.s32.totalorder %s18, 1
      %p83 = por %p81, %p82
      %p85 = scmp.ne.s32.totalorder %s68, %s84
      %p86 = scmp.eq.s32.totalorder %s18, 0
      %p87 = por %p85, %p86
      %s89 = sadd.s32 %s88, 1
      %p92 = scmp.eq.s32.totalorder %s12, 1
      %p93 = scmp.ne.s32.totalorder %s88, %s90
      %p94 = scmp.eq.s32.totalorder %s12, 0
      %p95 = por %p93, %p94
      %p96 = scmp.ne.s32.totalorder %s88, %s90
      %p97 = scmp.eq.s32.totalorder %s17, 1
      %p98 = por %p96, %p97
      %p99 = scmp.ne.s32.totalorder %s90, %s91
      %p100 = scmp.eq.s32.totalorder %s17, 0
      %p101 = por %p99, %p100
      %p102 = scmp.ne.s32.totalorder %s90, %s91
      %p103 = scmp.eq.s32.totalorder %s18, 1
      %p104 = por %p102, %p103
      %p106 = scmp.ne.s32.totalorder %s91, %s105
      %p107 = scmp.eq.s32.totalorder %s18, 0
      %p108 = por %p106, %p107
      %s109 = ssub.s32 %s19, %s31
      %s110 = ssub.s32 %s20, %s27
      %s111 = sor.u32 %s109, %s110
      %p112 = scmp.eq.s32.totalorder %s111, 0
      %s114 = sadd.s32 %s113, 1
      %s115 = scalar_select %p112, %s113, %s114
      %p118 = pneg %p112
      %p119 = scmp.eq.s32.totalorder %s12, 1
      %p120 = por %p118, %p119
      %p121 = scmp.ne.s32.totalorder %s113, %s116
      %p122 = scmp.eq.s32.totalorder %s12, 0
      %p123 = por %p121, %p122
      %p124 = scmp.ne.s32.totalorder %s113, %s116
      %p125 = scmp.eq.s32.totalorder %s17, 1
      %p126 = por %p124, %p125
      %p127 = scmp.ne.s32.totalorder %s116, %s117
      %p128 = scmp.eq.s32.totalorder %s17, 0
      %p129 = por %p127, %p128
      %p130 = scmp.ne.s32.totalorder %s116, %s117
      %p131 = scmp.eq.s32.totalorder %s18, 1
      %p132 = por %p130, %p131
      %p134 = scmp.ne.s32.totalorder %s117, %s133
      %p135 = scmp.eq.s32.totalorder %s18, 0
      %p136 = por %p134, %p135
      %p137 = scmp.le.s32.totalorder 1, %s12
      %p138 = scmp.lt.s32.totalorder %s12, 3
      %p139 = pnand %p137, %p138
      %p140 = pneg %p139
      // Predicated region
      $region9: #{downsample.1} parent=5 // pred_check
        _
      $region10: #{downsample.1} parent=5 // pred_check_branch
        %142 = sbr.rel (%p139) target = $region12
      $region11: #{downsample.1} parent=5 // pred_region
        %s143 = ssub.s32 %s12, 1
        // Predicated region
        $region13: #{downsample.1} parent=11 // pred_check
          %p144 = pneg %p101
        $region14: #{downsample.1} parent=11 // pred_check_branch
          %146 = sbr.rel (%p144) target = $region16
        $region15: #{downsample.1} parent=11 // pred_region
          _
        $region16: #{downsample.1} parent=11 // pred_fallthru
          _
      $region12: #{downsample.1} parent=5 // pred_fallthru
        _
      %p147 = scmp.lt.s32.totalorder %s12, 2
      // Predicated region
      $region17: #{downsample.1} parent=5 // pred_check
        %p148 = pneg %p147
      $region18: #{downsample.1} parent=5 // pred_check_branch
        %150 = sbr.rel (%p148) target = $region20
      $region19: #{downsample.1} parent=5 // pred_region
        // Predicated region
        $region21: #{downsample.1} parent=19 // pred_check
          %p151 = pneg %p46
        $region22: #{downsample.1} parent=19 // pred_check_branch
          %153 = sbr.rel (%p151) target = $region24
        $region23: #{downsample.1} parent=19 // pred_region
          %p154 = scmp.lt.s32.totalorder %s19, 1
          %s155 = scalar_select %p154, %s19, 1
          %p156 = scmp.lt.s32.totalorder %s20, 0
          %s157 = scalar_select %p156, %s20, 0
          %s158 = sadd.s32 %s157, %s155
          %s159 = smul.addr %s158, 4
          %s160 = scalar_lea.vmem %s0, %s159
        $region24: #{downsample.1} parent=19 // pred_fallthru
          _
        // Predicated region
        $region25: #{downsample.1} parent=19 // pred_check
          %p161 = pneg %p74
        $region26: #{downsample.1} parent=19 // pred_check_branch
          %163 = sbr.rel (%p161) target = $region28
        $region27: #{downsample.1} parent=19 // pred_region
          %p164 = scmp.lt.s32.totalorder %s19, 1
          %s165 = scalar_select %p164, %s19, 1
          %p166 = scmp.lt.s32.totalorder %s20, 0
          %s167 = scalar_select %p166, %s20, 0
          %s168 = sadd.s32 %s167, %s165
          %s169 = smul.addr %s168, 4
          %s170 = scalar_lea.vmem %s1, %s169
        $region28: #{downsample.1} parent=19 // pred_fallthru
          _
      $region20: #{downsample.1} parent=5 // pred_fallthru
        _
      %p171 = scmp.le.s32.totalorder 1, %s12
      %p172 = scmp.lt.s32.totalorder %s12, 3
      %p173 = pnand %p171, %p172
      %p174 = pneg %p173
      // Predicated region
      $region29: #{downsample.1} parent=5 // pred_check
        _
      $region30: #{downsample.1} parent=5 // pred_check_branch
        %176 = sbr.rel (%p173) target = $region32
      $region31: #{downsample.1} parent=5 // pred_region
        %s177 = ssub.s32 %s12, 1
        %p178 = scmp.lt.s32.totalorder %s21, 1
        %s179 = scalar_select %p178, %s21, 1
        %p180 = scmp.lt.s32.totalorder %s22, 0
        %s181 = scalar_select %p180, %s22, 0
        %s182 = sadd.s32 %s181, %s179
        %s183 = smul.addr %s182, 4
        %s184 = scalar_lea.vmem %s0, %s183
        %p185 = pneg %p52
        %p186 = pneg %p49
        %p187 = scmp.lt.s32.totalorder %s21, 1
        %s188 = scalar_select %p187, %s21, 1
        %p189 = scmp.lt.s32.totalorder %s22, 0
        %s190 = scalar_select %p189, %s22, 0
        %s191 = sadd.s32 %s190, %s188
        %s192 = smul.addr %s191, 4
        %s193 = scalar_lea.vmem %s1, %s192
        %p194 = pneg %p80
        %p195 = pneg %p77
        %p196 = pneg %p101
        %p197 = pneg %p98
        %p198 = pneg %p129
        %p199 = pneg %p126
        %s200 = sand.u32 %s116, 1
        %s201 = scalar_lea.sflag [#allocation4], %s200
        %s202 = sand.u32 %s116, 1
        %s203 = smul.addr %s202, 4
        %s204 = scalar_lea.vmem [#allocation3], %s203
        %p205 = scmp.lt.s32.totalorder %s21, 1
        %s206 = scalar_select %p205, %s21, 1
        %p207 = scmp.lt.s32.totalorder %s22, 0
        %s208 = scalar_select %p207, %s22, 0
        %s209 = sadd.s32 %s208, %s206
        %s210 = smul.addr %s209, 4
        %s211 = scalar_lea.vmem %s0, %s210
        %p212 = scmp.lt.s32.totalorder %s21, 1
        %s213 = scalar_select %p212, %s21, 1
        %p214 = scmp.lt.s32.totalorder %s22, 0
        %s215 = scalar_select %p214, %s22, 0
        %s216 = sadd.s32 %s215, %s213
        %s217 = smul.addr %s216, 4
        %s218 = scalar_lea.vmem %s1, %s217
        %v219 = vld [vmem:[%s211] sm:$0xf]
        %v220 = vld [vmem:[%s218] sm:$0xf]
        %p221 = scmp.eq.s32.totalorder %s22, 0
        // Predicated region
        $region33: #{downsample.1} parent=31 // pred_check
          %p222 = pneg %p221
        $region34: #{downsample.1} parent=31 // pred_check_branch
          %224 = sbr.rel (%p222) target = $region36
        $region35: #{downsample.1} parent=31 // pred_region
          %vm225 = vcmask 3072
          %226 = vst.msk [vmem:[#allocation2] sm:$0xf] %vm225, 0.0
        $region36: #{downsample.1} parent=31 // pred_fallthru
          _
        %vm227 = vcmask 1047616
        %228 = vrot.lane.b32.xlu0 %v220, 8
        %v229 = vpop.permute.xlu0 %228
        %v230 = vsel %vm227, %v229, %v220
        %231 = vrot.lane.b32.xlu0 %v230, 8
        %v232 = vpop.permute.xlu0 %231
        %v233 = vsel %vm227, %v232, %v220
        %v234 = vlaneseq
        %v235 = vand.u32 %v234, 127
        %vm236 = vcmp.eq.s32.totalorder %v235, 0
        %v237 = vld [vmem:[#allocation2] sm:$0xf]
        %239 = vset.pattern.permute.xlu0 0
        %240 = vperm.xlu0 %239, %v237
        %v241 = vpop.permute.xlu0 %240
        %244 = vrot.lane.b32.xlu0 %v233, 121
        %v245 = vpop.permute.xlu0 %244
        %v247 = vsel %vm236, %v241, %v245
        %249 = vrot.lane.b32.xlu0 %v220, 121
        %v250 = vpop.permute.xlu0 %249
        %vm252 = vcmask 3072
        %253 = vst.msk [vmem:[#allocation2] sm:$0xf] %vm252, %v250
        %v254 = vld [vmem:[%s2] sm:$0xf]
        %s255 = scalar_lea.vmem %s2, 4
        %v256 = vld [vmem:[%s255] sm:$0xf]
        %vm257 = vcmask 31744
        %v259 = vsel %vm257, %v256, 0
        %vm261 = vcmask 1043456
        %v263 = vsel %vm261, %v219, 0
        %265 = vmatpush.msra.mxu0 0.0
        %266 = vmatpush.msra.mxu0 0.0
        %267 = vmatpush.msra.mxu0 0.0
        %268 = vmatpush.msra.mxu0 0.0
        %269 = vmatpush.msra.mxu0 0.0
        %270 = vmatpush.msra.mxu0 0.0
        %271 = vmatpush.msra.mxu0 0.0
        %272 = vmatpush.msra.mxu0 0.0
        %273 = vmatpush.msra.mxu0 0.0
        %274 = vmatpush.msra.mxu0 0.0
        %275 = vmatpush.msra.mxu0 0.0
        %276 = vmatpush.msra.mxu0 0.0
        %277 = vmatpush.msra.mxu0 0.0
        %278 = vmatpush.msra.mxu0 0.0
        %279 = vmatpush.msra.mxu0 0.0
        %280 = vmatpush.msra.mxu0 %v263
        %281 = vmatmul.f32.gmra.mxu0 %v259
        %v282 = vpop.f32.mrf.mxu0
        %v283 = vadd.f32 0.0, %v282
        %284 = vdwg.mxu0
        %v286 = vsel %vm257, %v254, 0
        %v289 = vsel %vm261, %v247, 0
        %291 = vmatpush.msra.mxu0 0.0
        %292 = vmatpush.msra.mxu0 0.0
        %293 = vmatpush.msra.mxu0 0.0
        %294 = vmatpush.msra.mxu0 0.0
        %295 = vmatpush.msra.mxu0 0.0
        %296 = vmatpush.msra.mxu0 0.0
        %297 = vmatpush.msra.mxu0 0.0
        %298 = vmatpush.msra.mxu0 0.0
        %299 = vmatpush.msra.mxu0 0.0
        %300 = vmatpush.msra.mxu0 0.0
        %301 = vmatpush.msra.mxu0 0.0
        %302 = vmatpush.msra.mxu0 0.0
        %303 = vmatpush.msra.mxu0 0.0
        %304 = vmatpush.msra.mxu0 0.0
        %305 = vmatpush.msra.mxu0 0.0
        %306 = vmatpush.msra.mxu0 %v289
        %307 = vmatmul.f32.gmra.mxu0 %v286
        %v308 = vpop.f32.mrf.mxu0
        %v309 = vadd.f32 %v283, %v308
        %310 = vdwg.mxu0
        %s311 = scalar_lea.vmem %s2, 8
        %v312 = vld [vmem:[%s311] sm:$0xf]
        %v314 = vsel %vm257, %v312, 0
        %v316 = vsel %vm261, %v220, 0
        %318 = vmatpush.msra.mxu0 0.0
        %319 = vmatpush.msra.mxu0 0.0
        %320 = vmatpush.msra.mxu0 0.0
        %321 = vmatpush.msra.mxu0 0.0
        %322 = vmatpush.msra.mxu0 0.0
        %323 = vmatpush.msra.mxu0 0.0
        %324 = vmatpush.msra.mxu0 0.0
        %325 = vmatpush.msra.mxu0 0.0
        %326 = vmatpush.msra.mxu0 0.0
        %327 = vmatpush.msra.mxu0 0.0
        %328 = vmatpush.msra.mxu0 0.0
        %329 = vmatpush.msra.mxu0 0.0
        %330 = vmatpush.msra.mxu0 0.0
        %331 = vmatpush.msra.mxu0 0.0
        %332 = vmatpush.msra.mxu0 0.0
        %333 = vmatpush.msra.mxu0 %v316
        %334 = vmatmul.f32.gmra.mxu0 %v314
        %v335 = vpop.f32.mrf.mxu0
        %v336 = vadd.f32 0.0, %v335
        %337 = vdwg.mxu0
        %v338 = vadd.f32 %v309, %v336
        %vm339 = vcmp.gt.f32.partialorder %v338, 0.0
        %v340 = vmul.f32 %v338, 0.1
        %v341 = vsel %vm339, %v338, %v340
        %vm342 = vcmask 60416
        %343 = vst.msk [vmem:[%s204] sm:$0xf] %vm342, %v341
        %s344 = sand.u32 %s116, 1
        %s345 = scalar_lea.sflag [#allocation4], %s344
        %s346 = sand.u32 %s116, 1
        %s347 = smul.addr %s346, 4
        %s348 = scalar_lea.vmem [#allocation3], %s347
        // Predicated region
        $region37: #{downsample.1} parent=31 // pred_check
          %p349 = pneg %p126
        $region38: #{downsample.1} parent=31 // pred_check_branch
          %351 = sbr.rel (%p349) target = $region40
        $region39: #{downsample.1} parent=31 // pred_region
          %353 = vsyncadd %s345, 0
          %s354 = sadd.s32 %s22, %s21
          %s355 = smul.addr %s354, 4
          %s356 = scalar_lea.hbm %s3, %s355
          %s358 = sshll.u32 %s348, 4
          %s359 = int_to_ptr.vmem [resolvable:$true] %s358
          %s360 = sshll.u32 %s356, 4
          %s361 = int_to_ptr.hbm [resolvable:$true] %s360
          %363 = dma.vmem_to_hbm [thread:$0]  %s359, 64, %s361, %s345
        $region40: #{downsample.1} parent=31 // pred_fallthru
          _
      $region32: #{downsample.1} parent=5 // pred_fallthru
        _
      %p364 = scmp.le.s32.totalorder 2, %s12
      // Predicated region
      $region41: #{downsample.1} parent=5 // pred_check
        %p365 = pneg %p364
      $region42: #{downsample.1} parent=5 // pred_check_branch
        %367 = sbr.rel (%p365) target = $region44
      $region43: #{downsample.1} parent=5 // pred_region
        %s368 = ssub.s32 %s12, 2
        // Predicated region
        $region45: #{downsample.1} parent=43 // pred_check
          %p369 = pneg %p132
        $region46: #{downsample.1} parent=43 // pred_check_branch
          %371 = sbr.rel (%p369) target = $region48
        $region47: #{downsample.1} parent=43 // pred_region
          %s372 = sand.u32 %s117, 1
          %s373 = scalar_lea.sflag [#allocation4], %s372
          %s374 = sand.u32 %s117, 1
          %s375 = smul.addr %s374, 4
          %s376 = scalar_lea.vmem [#allocation3], %s375
          %378 = dma.done %s373, 64
        $region48: #{downsample.1} parent=43 // pred_fallthru
          _
      $region44: #{downsample.1} parent=5 // pred_fallthru
        _
    $region6: #{downsample.1} parent=1 // loop_footer
      %s16 = sadd.s32 1, %s12
    $region7: #{downsample.1} parent=1 // loop_footer_branch
      %11 = sbr.rel target = $region3
    $region8: #{downsample.1} parent=1 // loop_exit
      _
    %379 = vsyncpa [#allocation4], 1
    %s380 = scalar_lea.sflag [#allocation4], 1
    %381 = vsyncpa %s380, 1

</llo_original>
